<compile_context>
chip_gen: v7x
topology: tpu7x:2x2x1
jax: 0.10.0
libtpu: 0.0.40
codegen_flags: <defaults>
</compile_context>

<pallas_src>
import jax
import jax.numpy as jnp
from jax.experimental import pallas as pl
from jax.experimental.pallas import tpu as pltpu

# Split the HBM->HBM copy into at most this many concurrent DMAs.
_MAX_DMA_CHUNKS = 4
# Only bother chunking when the tensor is big enough that per-chunk DMAs are
# still multi-hundred-KiB; tiny tensors use a single DMA.
_CHUNK_THRESHOLD_BYTES = 4 << 20  # 4 MiB


def _make_dma_copy_kernel(chunk_bounds):
    """Build an HBM->HBM DMA copy kernel.

    chunk_bounds: tuple of (start, size) static slices along axis 0, or None
    to copy the whole array with a single DMA.
    """

    def kernel(x_hbm, o_hbm, sem):
        if chunk_bounds is None:
            cp = pltpu.make_async_copy(x_hbm, o_hbm, sem.at[0])
            cp.start()
            cp.wait()
        else:
            # Start every chunk's DMA before waiting on any of them so the
            # hardware can keep several DMA queues in flight concurrently.
            copies = []
            for idx, (start, size) in enumerate(chunk_bounds):
                cp = pltpu.make_async_copy(
                    x_hbm.at[pl.ds(start, size)],
                    o_hbm.at[pl.ds(start, size)],
                    sem.at[idx],
                )
                cp.start()
                copies.append(cp)
            for cp in copies:
                cp.wait()

    return kernel


def _chunk_plan(shape, nbytes):
    """Static leading-dim chunking plan (or None for a single whole-array DMA)."""
    if len(shape) == 0 or shape[0] < 2 or nbytes < _CHUNK_THRESHOLD_BYTES:
        return None
    d0 = shape[0]
    n_chunks = min(_MAX_DMA_CHUNKS, d0)
    base, rem = divmod(d0, n_chunks)
    bounds = []
    start = 0
    for i in range(n_chunks):
        size = base + (1 if i < rem else 0)
        bounds.append((start, size))
        start += size
    return tuple(bounds)


def _identity_copy(x):
    """Materialized copy of x via direct HBM->HBM DMA (no VMEM staging)."""
    chunk_bounds = _chunk_plan(x.shape, x.nbytes)
    num_sems = 1 if chunk_bounds is None else len(chunk_bounds)
    kernel = _make_dma_copy_kernel(chunk_bounds)

    return pl.pallas_call(
        kernel,
        out_shape=jax.ShapeDtypeStruct(x.shape, x.dtype),
        in_specs=[pl.BlockSpec(memory_space=pl.ANY)],
        out_specs=pl.BlockSpec(memory_space=pl.ANY),
        scratch_shapes=[pltpu.SemaphoreType.DMA((num_sems,))],
    )(x)


def identity_forward(x, *, materialize=False):
    """Identity.forward(x) == x.

    Default (fast) path: return x directly — zero HBM traffic.  Pass
    materialize=True only if a distinct output buffer is truly required; that
    runs the HBM->HBM DMA copy kernel.
    """
    if not materialize:
        return x
    return _identity_copy(x)


if __name__ == "__main__":
    key = jax.random.PRNGKey(0)
    # Small NCHW input consistent with a resnet-style module.
    x = jax.random.normal(key, (2, 4, 16, 16), dtype=jnp.float32)

    # Fast path: identity returns its input unchanged (no kernel, no copy).
    y_fast = identity_forward(x)
    jax.block_until_ready(y_fast)
    assert y_fast.shape == x.shape and y_fast.dtype == x.dtype
    assert bool(jnp.all(y_fast == x))

    # Materialized path: single whole-array HBM->HBM DMA.
    y_copy = identity_forward(x, materialize=True)
    jax.block_until_ready(y_copy)
    assert y_copy.shape == x.shape and y_copy.dtype == x.dtype
    assert bool(jnp.all(y_copy == x))

    # Unaligned-size tensor (total elements not a multiple of 128) now goes
    # through the same DMA path — no (8,128) special casing, no VMEM staging.
    x_odd = jax.random.normal(jax.random.PRNGKey(1), (2, 3, 5, 7), dtype=jnp.float32)
    y_odd = identity_forward(x_odd, materialize=True)
    jax.block_until_ready(y_odd)
    assert y_odd.shape == x_odd.shape and y_odd.dtype == x_odd.dtype
    assert bool(jnp.all(y_odd == x_odd))

    # Moderately sized tensor (4 MiB) to exercise the multi-chunk concurrent
    # DMA path.
    x_big = jax.random.normal(jax.random.PRNGKey(2), (8, 256, 512), dtype=jnp.float32)
    y_big = identity_forward(x_big, materialize=True)
    jax.block_until_ready(y_big)
    assert y_big.shape == x_big.shape and y_big.dtype == x_big.dtype
    assert bool(jnp.all(y_big == x_big))

    print("KERNEL_OK")
</pallas_src>

<mosaic_0001>
module attributes {stable_mosaic.version = 11 : i64} {
  func.func @kernel(%arg0: memref<2x4x16x16xf32, #tpu.memory_space<any>>, %arg1: memref<2x4x16x16xf32, #tpu.memory_space<any>>, %arg2: memref<1x!tpu.dma_semaphore, #tpu.memory_space<semaphore_mem>>) attributes {dimension_semantics = [], scalar_prefetch = 0 : i64, scratch_operands = 1 : i64, tpu.core_type = #tpu.core_type<tc>} {
    %c0_i32 = arith.constant 0 : i32
    %0 = tpu.memref_slice %arg2[%c0_i32] : memref<1x!tpu.dma_semaphore, #tpu.memory_space<semaphore_mem>> -> memref<1x!tpu.dma_semaphore, #tpu.memory_space<semaphore_mem>>
    %1 = tpu.memref_squeeze %0 : memref<1x!tpu.dma_semaphore, #tpu.memory_space<semaphore_mem>> -> memref<!tpu.dma_semaphore, #tpu.memory_space<semaphore_mem>>
    tpu.enqueue_dma source(%arg0 : memref<2x4x16x16xf32, #tpu.memory_space<any>>) target(%arg1 : memref<2x4x16x16xf32, #tpu.memory_space<any>>) target_semaphore(%1 : memref<!tpu.dma_semaphore, #tpu.memory_space<semaphore_mem>>)
    %c0_i32_0 = arith.constant 0 : i32
    %2 = tpu.memref_slice %arg2[%c0_i32_0] : memref<1x!tpu.dma_semaphore, #tpu.memory_space<semaphore_mem>> -> memref<1x!tpu.dma_semaphore, #tpu.memory_space<semaphore_mem>>
    %3 = tpu.memref_squeeze %2 : memref<1x!tpu.dma_semaphore, #tpu.memory_space<semaphore_mem>> -> memref<!tpu.dma_semaphore, #tpu.memory_space<semaphore_mem>>
    tpu.wait_dma2 semaphore(%3 : memref<!tpu.dma_semaphore, #tpu.memory_space<semaphore_mem>>) src(%arg0 : memref<2x4x16x16xf32, #tpu.memory_space<any>>) dst(%arg1 : memref<2x4x16x16xf32, #tpu.memory_space<any>>)
    return
  }
}

</mosaic_0001>

<llo_original>
// kernel: tpu_custom_call.1
$region0: #{tpu_custom_call.1}
  #allocation0 [shape = 'u32[]', space=smem, size = 0x4, offset = 0x4, fixed_abs, tag = 'smem constant byte address 0x4 - core index']
  #allocation1 [shape = 'u32[144,128]{1,0:T(1,128)}', space=vmem, size = 0x12000, scoped, tag = 'internal scratch']
  #allocation2 [shape = 's32[1]{0}', space=sflag, size = 0x4, scoped, tag = 'scratch operand']
  #allocation3 [shape = 's32[]', space=sflag, size = 0x4, offset = 0, fixed_abs, tag = 'sflag constant byte address 0x0 - dummy sync flag']
  #allocation4 [shape = 'u32[0]{0}', space=smem, size = 0, offset = 0, fixed_abs, tag = 'smem constant byte address 0x0 - null']
  %s0 = inlined_call_operand.hbm [shape: f32[2,4,16,16], index: 0, kind: input, shape index: {}]
  %s1 = inlined_call_operand.hbm [shape: f32[2,4,16,16], index: 1, kind: output, shape index: {}]
  %s2 = sld [smem:[#allocation0]]
  $region2: #{tpu_custom_call.1} parent=0
    _
  %s4 = ssub.s32 1, %s2
  %s5 = scalar_select 0, %s4, %s2
  %s7 = sshll.u32 1, 14
  %s8 = sxor.u32 4294967295, %s7
  %s11 = sshll.u32 3, 24
  %s12 = sxor.u32 4294967295, %s11
  %s13 = sand.u32 0, %s12
  %s15 = sor.u32 %s13, 0
  %18 = dma.general %s0, 2048, %s1, [#allocation2], [#allocation3], [#allocation4], %s15, 0
  %s19 = smul.u32 2, 4
  %s20 = smul.u32 %s19, 16
  %s21 = smul.u32 %s20, 1
  %s22 = sshll.u32 %s21, 4
  %23 = dma.done [#allocation2], %s22
  %24 = vsyncmov [#allocation2]
  %s25 = vpop.sfrf %24
  %p26 = scmp.eq.s32.totalorder %s25, 0
  %p27 = pneg %p26
  %29 = shalt.err (%p27)

</llo_original>
